<compile_context>
chip_gen: v7x
topology: tpu7x:2x2x1
jax: 0.10.0
libtpu: 0.0.40
codegen_flags: <defaults>
</compile_context>

<pallas_src>
import functools

import jax
import jax.numpy as jnp
from jax.experimental import pallas as pl
from jax.experimental.pallas import tpu as pltpu

_LANE = 128
_SUBLANE = 8
_TILE_CANDIDATES = (1024, 512, 256, 128, 64, 32, 16, 8)
# Only single-buffer the weights when they are big enough to matter; keeps the
# default pipeline configuration on small/demo shapes.
_SINGLE_BUFFER_WEIGHT_BYTES = 4 * 1024 * 1024


def _round_up(x, m):
    return -(-x // m) * m


def _vmem_capacity_bytes():
    """Physical per-core VMEM; conservative fallback (v7x: 64 MiB) on failure."""
    try:
        cap = int(getattr(pltpu.get_tpu_info(), "vmem_capacity_bytes", 0))
        if cap > 0:
            return cap
    except Exception:
        pass
    return 64 * 1024 * 1024


def _plan_tiles(n, per_row_bytes, resident_bytes, budget_bytes):
    """Pick a row tile so double-buffered tiles + resident weights fit the
    VMEM budget, and keep >=2 grid steps whenever the batch allows it
    (restores DMA/compute overlap and lets "parallel" use both v7x cores).
    Returns (tile_n, n_padded) with n_padded % tile_n == 0."""
    avail = budget_bytes - resident_bytes
    fit_rows = max(avail // max(per_row_bytes, 1), _SUBLANE)
    tile = _SUBLANE
    for cand in _TILE_CANDIDATES:
        if cand <= fit_rows:
            tile = cand
            break
    while tile > _SUBLANE and _round_up(n, tile) // tile < 2:
        tile //= 2
    return tile, _round_up(n, tile)


# ----------------------------------------------------------------------------
# Pallas kernel: fused 2-layer MLP embedding applied to k row-tiles that share
# one set of weights.  refs = (x_0..x_{k-1}, w1, b1, w2, b2, o_0..o_{k-1}).
# ----------------------------------------------------------------------------
def _make_mlp_kernel(n_inputs, tile_n):
    def kernel(*refs):
        x_refs = refs[:n_inputs]
        w1_ref, b1_ref, w2_ref, b2_ref = refs[n_inputs:n_inputs + 4]
        o_refs = refs[n_inputs + 4:]

        w1 = w1_ref[...]          # [D, Hp]   bf16 (VMEM-resident across grid)
        b1 = b1_ref[...]          # [1, Hp]   f32
        w2 = w2_ref[...]          # [Hp, Ep]  bf16
        b2 = b2_ref[...]          # [1, Ep]   f32

        # In-kernel f32 -> bf16 cast; stack the k row tiles so each layer is a
        # single MXU pass with M = k * tile_n (weights loaded into the
        # systolic array once per grid step instead of k times).
        x = jnp.concatenate([r[...].astype(jnp.bfloat16) for r in x_refs],
                            axis=0)                                   # [k*tn, D]
        h = jnp.dot(x, w1, preferred_element_type=jnp.float32) + b1   # MXU, f32 acc
        h = jnp.maximum(h, 0.0).astype(jnp.bfloat16)                  # ReLU (f32) -> bf16
        o = jnp.dot(h, w2, preferred_element_type=jnp.float32) + b2   # MXU, f32 acc
        for idx, o_ref in enumerate(o_refs):
            o_ref[...] = o[idx * tile_n:(idx + 1) * tile_n].astype(o_ref.dtype)

    return kernel


def _embed_many(xs, w1p, b1p, w2p, b2p, *, out_dtype=jnp.float32):
    """xs: list of [N, D] f32 arrays -> tuple of [N, Ep] out_dtype arrays."""
    k = len(xs)
    n, d = xs[0].shape
    hp = w1p.shape[1]
    ep = w2p.shape[1]

    cap = _vmem_capacity_bytes()
    out_bytes = jnp.dtype(out_dtype).itemsize
    weight_bytes = d * hp * 2 + hp * ep * 2 + (hp + ep) * 4

    # Single-buffer the grid-invariant weights only when they are big enough
    # for the saving to matter (avoids exercising the option on tiny shapes).
    single_buffer_weights = weight_bytes > _SINGLE_BUFFER_WEIGHT_BYTES
    resident = weight_bytes * (1 if single_buffer_weights else 2)

    # Per-row VMEM (per input): double-buffered f32 input + out_dtype output
    # tiles plus in-kernel temporaries (bf16 stacked x, f32/bf16 hidden, f32
    # pre-store output).
    per_row = k * (2 * 4 * d + 2 * d + 6 * hp + 4 * ep + 2 * out_bytes * ep)
    tile_n, n_pad = _plan_tiles(n, per_row, resident, int(0.5 * cap))

    if n_pad != n:
        xs = [jnp.pad(x, ((0, n_pad - n), (0, 0))) for x in xs]
    grid = (n_pad // tile_n,)

    x_spec = pl.BlockSpec((tile_n, d), lambda i: (i, 0))
    o_spec = pl.BlockSpec((tile_n, ep), lambda i: (i, 0))

    def const_spec(shape):
        if single_buffer_weights:
            return pl.BlockSpec(shape, lambda i: (0, 0),
                                pipeline_mode=pl.Buffered(1))
        return pl.BlockSpec(shape, lambda i: (0, 0))

    w_specs = [const_spec((d, hp)), const_spec((1, hp)),
               const_spec((hp, ep)), const_spec((1, ep))]

    flops = k * n_pad * 2 * (d * hp + hp * ep)
    bytes_accessed = (k * n_pad * d * 4            # f32 inputs (cast in kernel)
                      + weight_bytes               # bf16 weights, f32 biases
                      + k * n_pad * ep * out_bytes)
    cost = pl.CostEstimate(flops=flops, transcendentals=0,
                           bytes_accessed=bytes_accessed)

    vmem_est = resident + tile_n * per_row
    vmem_limit = min(int(0.85 * cap), max(2 * vmem_est, 32 * 1024 * 1024))
    cparams = pltpu.CompilerParams(dimension_semantics=("parallel",),
                                   vmem_limit_bytes=vmem_limit)

    # TODO(synk): if D grows into the tens of thousands, add a trailing
    # "arbitrary" K grid axis over D with a VMEM accumulator (pl.when phases).
    outs = pl.pallas_call(
        _make_mlp_kernel(k, tile_n),
        out_shape=tuple(jax.ShapeDtypeStruct((n_pad, ep), out_dtype)
                        for _ in range(k)),
        grid=grid,
        in_specs=[x_spec] * k + w_specs,
        out_specs=tuple(o_spec for _ in range(k)),
        compiler_params=cparams,
        cost_estimate=cost,
    )(*xs, w1p, b1p, w2p, b2p)

    if n_pad != n:
        outs = tuple(o[:n] for o in outs)   # drop bias-only padded rows
    return outs


# ----------------------------------------------------------------------------
# Parameters: f32 "checkpoint" params + a packing step that pads to lane-dense
# shapes and casts the MXU operands to bf16.  Zero padding is exact: padded
# hidden cols give ReLU(0)=0, padded output cols are 0 and sliced off.
# ----------------------------------------------------------------------------
def init_params(key, in_dim, hidden_dim, embed_dim):
    k1, k2 = jax.random.split(key)
    w1 = jax.random.normal(k1, (in_dim, hidden_dim), jnp.float32) * 0.02
    b1 = jnp.zeros((1, hidden_dim), jnp.float32)
    w2 = jax.random.normal(k2, (hidden_dim, embed_dim), jnp.float32) * 0.02
    b2 = jnp.zeros((1, embed_dim), jnp.float32)
    return {"w1": w1, "b1": b1, "w2": w2, "b2": b2}


def pack_params(params):
    w1, b1, w2, b2 = params["w1"], params["b1"], params["w2"], params["b2"]
    d, hid = w1.shape
    emb = w2.shape[1]
    hp = _round_up(hid, _LANE)
    ep = _round_up(emb, _LANE)
    pad2 = lambda a, r, c: jnp.pad(a, ((0, r - a.shape[0]), (0, c - a.shape[1])))
    return {
        "w1": pad2(w1, d, hp).astype(jnp.bfloat16),
        "b1": pad2(b1, 1, hp).astype(jnp.float32),
        "w2": pad2(w2, hp, ep).astype(jnp.bfloat16),
        "b2": pad2(b2, 1, ep).astype(jnp.float32),
    }


# ----------------------------------------------------------------------------
# TripletNet forward: apply the shared base_net to x1, x2, x3 (one kernel
# launch, weights loaded once, no wrapper-side concatenation or cast pass).
# ----------------------------------------------------------------------------
def triplet_net_forward(packed, x1, x2, x3, *, emb_dim):
    b = x1.shape[0]
    flat = lambda x: x.reshape(b, -1)               # NCHW row-major flatten, stays f32
    o1, o2, o3 = _embed_many([flat(x1), flat(x2), flat(x3)],
                             packed["w1"], packed["b1"],
                             packed["w2"], packed["b2"])
    # Padded columns are exactly zero; if the consumer is an L2 triplet loss
    # this slice (and the f32 output dtype) could be dropped for less traffic.
    return o1[:, :emb_dim], o2[:, :emb_dim], o3[:, :emb_dim]


def get_embedding(packed, x, *, emb_dim):
    b = x.shape[0]
    (o,) = _embed_many([x.reshape(b, -1)],
                       packed["w1"], packed["b1"],
                       packed["w2"], packed["b2"])
    return o[:, :emb_dim]


if __name__ == "__main__":
    # Small shapes consistent with an NCHW conv-style input.
    B, C, H, W = 2, 4, 16, 16
    D = C * H * W          # 1024 flattened features
    HID = 32
    EMB = 32

    key = jax.random.PRNGKey(0)
    kp, k1, k2, k3 = jax.random.split(key, 4)

    params = init_params(kp, D, HID, EMB)
    packed = pack_params(params)

    x1 = jax.random.normal(k1, (B, C, H, W), jnp.float32)
    x2 = jax.random.normal(k2, (B, C, H, W), jnp.float32)
    x3 = jax.random.normal(k3, (B, C, H, W), jnp.float32)

    fwd = jax.jit(functools.partial(triplet_net_forward, emb_dim=EMB))
    out1, out2, out3 = fwd(packed, x1, x2, x3)
    jax.block_until_ready((out1, out2, out3))

    # Pure-JAX f32 reference of the same base_net (kernel uses bf16 MXU
    # operands with f32 accumulation, so tolerance is loosened accordingly).
    def ref_base(x):
        h = jnp.maximum(x.reshape(x.shape[0], -1) @ params["w1"] + params["b1"], 0.0)
        return h @ params["w2"] + params["b2"]

    assert out1.shape == (B, EMB) and out2.shape == (B, EMB) and out3.shape == (B, EMB)
    assert jnp.allclose(out1, ref_base(x1), atol=1e-2, rtol=1e-2)
    assert jnp.allclose(out2, ref_base(x2), atol=1e-2, rtol=1e-2)
    assert jnp.allclose(out3, ref_base(x3), atol=1e-2, rtol=1e-2)

    emb1 = jax.jit(functools.partial(get_embedding, emb_dim=EMB))(packed, x1)
    jax.block_until_ready(emb1)
    assert emb1.shape == (B, EMB)
    assert jnp.allclose(emb1, ref_base(x1), atol=1e-2, rtol=1e-2)

    print("KERNEL_OK")
</pallas_src>

<mosaic_0001>
module attributes {stable_mosaic.version = 11 : i64} {
  func.func @kernel(%arg0: i32, %arg1: memref<8x1024xf32, #tpu.memory_space<vmem>>, %arg2: memref<8x1024xf32, #tpu.memory_space<vmem>>, %arg3: memref<8x1024xf32, #tpu.memory_space<vmem>>, %arg4: memref<1024x128xbf16, #tpu.memory_space<vmem>>, %arg5: memref<1x128xf32, #tpu.memory_space<vmem>>, %arg6: memref<128x128xbf16, #tpu.memory_space<vmem>>, %arg7: memref<1x128xf32, #tpu.memory_space<vmem>>, %arg8: memref<8x128xf32, #tpu.memory_space<vmem>>, %arg9: memref<8x128xf32, #tpu.memory_space<vmem>>, %arg10: memref<8x128xf32, #tpu.memory_space<vmem>>) attributes {dimension_semantics = [#tpu.dimension_semantics<parallel>], iteration_bounds = array<i64: 1>, scalar_prefetch = 0 : i64, scratch_operands = 0 : i64, tpu.core_type = #tpu.core_type<tc>, window_params = [{transform_indices = @transform_0, window_bounds = array<i64: 8, 1024>}, {transform_indices = @transform_1, window_bounds = array<i64: 8, 1024>}, {transform_indices = @transform_2, window_bounds = array<i64: 8, 1024>}, {pipeline_mode = #tpu.pipeline_mode<synchronous>, transform_indices = @transform_3, window_bounds = array<i64: 1024, 128>}, {pipeline_mode = #tpu.pipeline_mode<synchronous>, transform_indices = @transform_4, window_bounds = array<i64: 1, 128>}, {pipeline_mode = #tpu.pipeline_mode<synchronous>, transform_indices = @transform_5, window_bounds = array<i64: 128, 128>}, {pipeline_mode = #tpu.pipeline_mode<synchronous>, transform_indices = @transform_6, window_bounds = array<i64: 1, 128>}, {transform_indices = @transform_7, window_bounds = array<i64: 8, 128>}, {transform_indices = @transform_8, window_bounds = array<i64: 8, 128>}, {transform_indices = @transform_9, window_bounds = array<i64: 8, 128>}]} {
    %c0 = arith.constant 0 : index
    %c0_0 = arith.constant 0 : index
    %0 = vector.load %arg4[%c0, %c0_0] : memref<1024x128xbf16, #tpu.memory_space<vmem>>, vector<1024x128xbf16>
    %c0_1 = arith.constant 0 : index
    %c0_2 = arith.constant 0 : index
    %1 = vector.load %arg5[%c0_1, %c0_2] : memref<1x128xf32, #tpu.memory_space<vmem>>, vector<1x128xf32>
    %c0_3 = arith.constant 0 : index
    %c0_4 = arith.constant 0 : index
    %2 = vector.load %arg6[%c0_3, %c0_4] : memref<128x128xbf16, #tpu.memory_space<vmem>>, vector<128x128xbf16>
    %c0_5 = arith.constant 0 : index
    %c0_6 = arith.constant 0 : index
    %3 = vector.load %arg7[%c0_5, %c0_6] : memref<1x128xf32, #tpu.memory_space<vmem>>, vector<1x128xf32>
    %c0_7 = arith.constant 0 : index
    %c0_8 = arith.constant 0 : index
    %4 = vector.load %arg1[%c0_7, %c0_8] : memref<8x1024xf32, #tpu.memory_space<vmem>>, vector<8x1024xf32>
    %5 = arith.truncf %4 : vector<8x1024xf32> to vector<8x1024xbf16>
    %c0_9 = arith.constant 0 : index
    %c0_10 = arith.constant 0 : index
    %6 = vector.load %arg2[%c0_9, %c0_10] : memref<8x1024xf32, #tpu.memory_space<vmem>>, vector<8x1024xf32>
    %7 = arith.truncf %6 : vector<8x1024xf32> to vector<8x1024xbf16>
    %c0_11 = arith.constant 0 : index
    %c0_12 = arith.constant 0 : index
    %8 = vector.load %arg3[%c0_11, %c0_12] : memref<8x1024xf32, #tpu.memory_space<vmem>>, vector<8x1024xf32>
    %9 = arith.truncf %8 : vector<8x1024xf32> to vector<8x1024xbf16>
    %10 = tpu.concatenate %5, %7, %9 in 0 : vector<8x1024xbf16>, vector<8x1024xbf16>, vector<8x1024xbf16> -> vector<24x1024xbf16>
    %cst = arith.constant dense<0.000000e+00> : vector<24x128xf32>
    %11 = tpu.matmul %10, %0, %cst {dimension_numbers = #tpu.dot_dimension_numbers<[1], [0], [0], [1], [0, 0, 1, 1], [], []>} : vector<24x1024xbf16>, vector<1024x128xbf16>, vector<24x128xf32> -> vector<24x128xf32>
    %12 = vector.broadcast %1 : vector<1x128xf32> to vector<24x128xf32>
    %13 = arith.addf %11, %12 : vector<24x128xf32>
    %cst_13 = arith.constant 0.000000e+00 : f32
    %14 = vector.broadcast %cst_13 : f32 to vector<24x128xf32>
    %15 = arith.maximumf %13, %14 : vector<24x128xf32>
    %16 = arith.truncf %15 : vector<24x128xf32> to vector<24x128xbf16>
    %cst_14 = arith.constant dense<0.000000e+00> : vector<24x128xf32>
    %17 = tpu.matmul %16, %2, %cst_14 {dimension_numbers = #tpu.dot_dimension_numbers<[1], [0], [0], [1], [0, 0, 1, 1], [], []>} : vector<24x128xbf16>, vector<128x128xbf16>, vector<24x128xf32> -> vector<24x128xf32>
    %18 = vector.broadcast %3 : vector<1x128xf32> to vector<24x128xf32>
    %19 = arith.addf %17, %18 : vector<24x128xf32>
    %20 = vector.extract_strided_slice %19 {offsets = [0, 0], sizes = [8, 128], strides = [1, 1]} : vector<24x128xf32> to vector<8x128xf32>
    %c0_15 = arith.constant 0 : index
    %c0_16 = arith.constant 0 : index
    %21 = vector.load %arg8[%c0_15, %c0_16] : memref<8x128xf32, #tpu.memory_space<vmem>>, vector<8x128xf32>
    tpu.vector_store %arg8[%c0_15, %c0_16], %20 {strides = array<i32>} : memref<8x128xf32, #tpu.memory_space<vmem>>, vector<8x128xf32>,
    %22 = vector.extract_strided_slice %19 {offsets = [8, 0], sizes = [8, 128], strides = [1, 1]} : vector<24x128xf32> to vector<8x128xf32>
    %c0_17 = arith.constant 0 : index
    %c0_18 = arith.constant 0 : index
    %23 = vector.load %arg9[%c0_17, %c0_18] : memref<8x128xf32, #tpu.memory_space<vmem>>, vector<8x128xf32>
    tpu.vector_store %arg9[%c0_17, %c0_18], %22 {strides = array<i32>} : memref<8x128xf32, #tpu.memory_space<vmem>>, vector<8x128xf32>,
    %24 = vector.extract_strided_slice %19 {offsets = [16, 0], sizes = [8, 128], strides = [1, 1]} : vector<24x128xf32> to vector<8x128xf32>
    %c0_19 = arith.constant 0 : index
    %c0_20 = arith.constant 0 : index
    %25 = vector.load %arg10[%c0_19, %c0_20] : memref<8x128xf32, #tpu.memory_space<vmem>>, vector<8x128xf32>
    tpu.vector_store %arg10[%c0_19, %c0_20], %24 {strides = array<i32>} : memref<8x128xf32, #tpu.memory_space<vmem>>, vector<8x128xf32>,
    return
  }
  func.func @transform_0(%arg0: i32) -> (i32, i32) {
    %c0_i32 = arith.constant 0 : i32
    %c0_i32_0 = arith.constant 0 : i32
    return %arg0, %c0_i32 : i32, i32
  }
  func.func @transform_1(%arg0: i32) -> (i32, i32) {
    %c0_i32 = arith.constant 0 : i32
    %c0_i32_0 = arith.constant 0 : i32
    return %arg0, %c0_i32 : i32, i32
  }
  func.func @transform_2(%arg0: i32) -> (i32, i32) {
    %c0_i32 = arith.constant 0 : i32
    %c0_i32_0 = arith.constant 0 : i32
    return %arg0, %c0_i32 : i32, i32
  }
  func.func @transform_3(%arg0: i32) -> (i32, i32) {
    %c0_i32 = arith.constant 0 : i32
    %c0_i32_0 = arith.constant 0 : i32
    %c0_i32_1 = arith.constant 0 : i32
    return %c0_i32, %c0_i32_0 : i32, i32
  }
  func.func @transform_4(%arg0: i32) -> (i32, i32) {
    %c0_i32 = arith.constant 0 : i32
    %c0_i32_0 = arith.constant 0 : i32
    %c0_i32_1 = arith.constant 0 : i32
    return %c0_i32, %c0_i32_0 : i32, i32
  }
  func.func @transform_5(%arg0: i32) -> (i32, i32) {
    %c0_i32 = arith.constant 0 : i32
    %c0_i32_0 = arith.constant 0 : i32
    %c0_i32_1 = arith.constant 0 : i32
    return %c0_i32, %c0_i32_0 : i32, i32
  }
  func.func @transform_6(%arg0: i32) -> (i32, i32) {
    %c0_i32 = arith.constant 0 : i32
    %c0_i32_0 = arith.constant 0 : i32
    %c0_i32_1 = arith.constant 0 : i32
    return %c0_i32, %c0_i32_0 : i32, i32
  }
  func.func @transform_7(%arg0: i32) -> (i32, i32) {
    %c0_i32 = arith.constant 0 : i32
    %c0_i32_0 = arith.constant 0 : i32
    return %arg0, %c0_i32 : i32, i32
  }
  func.func @transform_8(%arg0: i32) -> (i32, i32) {
    %c0_i32 = arith.constant 0 : i32
    %c0_i32_0 = arith.constant 0 : i32
    return %arg0, %c0_i32 : i32, i32
  }
  func.func @transform_9(%arg0: i32) -> (i32, i32) {
    %c0_i32 = arith.constant 0 : i32
    %c0_i32_0 = arith.constant 0 : i32
    return %arg0, %c0_i32 : i32, i32
  }
}

</mosaic_0001>

<llo_original>
// kernel: triplet_net_forward.1
$region0: #{triplet_net_forward.1}
  #allocation0 [shape = 'u32[]', space=smem, size = 0x4, offset = 0x4, fixed_abs, tag = 'smem constant byte address 0x4 - core index']
  #allocation1 [shape = 'u32[144,128]{1,0:T(1,128)}', space=vmem, size = 0x12000, scoped, tag = 'internal scratch']
  %s0 = inlined_call_operand.vmem [shape: f32[8,1024], index: 0, kind: input, shape index: {}]
  %s1 = inlined_call_operand.vmem [shape: f32[8,1024], index: 1, kind: input, shape index: {}]
  %s2 = inlined_call_operand.vmem [shape: f32[8,1024], index: 2, kind: input, shape index: {}]
  %s3 = inlined_call_operand.vmem [shape: bf16[1024,128], index: 3, kind: input, shape index: {}]
  %s4 = inlined_call_operand.vmem [shape: f32[1,128], index: 4, kind: input, shape index: {}]
  %s5 = inlined_call_operand.hbm [shape: bf16[128,128], index: 5, kind: input, shape index: {}]
  %s6 = inlined_call_operand.vmem [shape: f32[1,128], index: 6, kind: input, shape index: {}]
  %s7 = inlined_call_operand.vmem [shape: f32[8,128], index: 7, kind: output, shape index: {0}]
  %s8 = inlined_call_operand.vmem [shape: f32[8,128], index: 8, kind: output, shape index: {1}]
  %s9 = inlined_call_operand.vmem [shape: f32[8,128], index: 9, kind: output, shape index: {2}]
  %10 = xla_tuple %s7, %s8, %s9
  %s11 = sld [smem:[#allocation0]]
  $region58: #{triplet_net_forward.1} parent=0
    _
  %s13 = ssub.s32 1, %s11
  %s14 = scalar_select 0, %s13, %s11
  $region1: #{triplet_net_forward.1} parent=0
    #allocation2 [shape = 'u8[32768]{0}', space=vmem, size = 0x8000, scoped, tag = 'input window, operand 5, single buffered']
    #allocation3 [shape = 's32[1]{0}', space=sflag, size = 0x4, scoped, tag = 'scoped memory for triplet_net_forward.1']
    %15 = vsyncpa [#allocation3], 0
    // Predicated region
    $region2: #{triplet_net_forward.1} parent=1 // pred_check
      _
    $region3: #{triplet_net_forward.1} parent=1 // pred_check_branch
      %17 = sbr.rel (0) target = $region5
    $region4: #{triplet_net_forward.1} parent=1 // pred_region
      _
    $region5: #{triplet_net_forward.1} parent=1 // pred_fallthru
      _
    // Predicated region
    $region6: #{triplet_net_forward.1} parent=1 // pred_check
      _
    $region7: #{triplet_net_forward.1} parent=1 // pred_check_branch
      %19 = sbr.rel (0) target = $region9
    $region8: #{triplet_net_forward.1} parent=1 // pred_region
      _
    $region9: #{triplet_net_forward.1} parent=1 // pred_fallthru
      _
    // Predicated region
    $region10: #{triplet_net_forward.1} parent=1 // pred_check
      _
    $region11: #{triplet_net_forward.1} parent=1 // pred_check_branch
      %21 = sbr.rel (0) target = $region13
    $region12: #{triplet_net_forward.1} parent=1 // pred_region
      _
    $region13: #{triplet_net_forward.1} parent=1 // pred_fallthru
      _
    // Predicated region
    $region14: #{triplet_net_forward.1} parent=1 // pred_check
      _
    $region15: #{triplet_net_forward.1} parent=1 // pred_check_branch
      %23 = sbr.rel (0) target = $region17
    $region16: #{triplet_net_forward.1} parent=1 // pred_region
      _
    $region17: #{triplet_net_forward.1} parent=1 // pred_fallthru
      _
    // Predicated region
    $region18: #{triplet_net_forward.1} parent=1 // pred_check
      _
    $region19: #{triplet_net_forward.1} parent=1 // pred_check_branch
      %25 = sbr.rel (0) target = $region21
    $region20: #{triplet_net_forward.1} parent=1 // pred_region
      _
    $region21: #{triplet_net_forward.1} parent=1 // pred_fallthru
      _
    // Predicated region
    $region22: #{triplet_net_forward.1} parent=1 // pred_check
      _
    $region23: #{triplet_net_forward.1} parent=1 // pred_check_branch
      %27 = sbr.rel (0) target = $region25
    $region24: #{triplet_net_forward.1} parent=1 // pred_region
      %s29 = ssub.s32 1024, 1024
      %30 = vsyncadd [#allocation3], %s29
      %s31 = sshll.u32 [#allocation2], 4
      %s32 = int_to_ptr.vmem [resolvable:$true] %s31
      %37 = dma.hbm_to_vmem [thread:$0]  %s5, 1024, %s32, [#allocation3], 64, 64, 4
    $region25: #{triplet_net_forward.1} parent=1 // pred_fallthru
      _
    // Predicated region
    $region26: #{triplet_net_forward.1} parent=1 // pred_check
      _
    $region27: #{triplet_net_forward.1} parent=1 // pred_check_branch
      %39 = sbr.rel (0) target = $region29
    $region28: #{triplet_net_forward.1} parent=1 // pred_region
      _
    $region29: #{triplet_net_forward.1} parent=1 // pred_fallthru
      _
    // Predicated region
    $region30: #{triplet_net_forward.1} parent=1 // pred_check
      _
    $region31: #{triplet_net_forward.1} parent=1 // pred_check_branch
      %41 = sbr.rel (0) target = $region33
    $region32: #{triplet_net_forward.1} parent=1 // pred_region
      %42 = dma.done [#allocation3], 1024
    $region33: #{triplet_net_forward.1} parent=1 // pred_fallthru
      _
    %v44 = vld [vmem:[%s3] sm:$0xf]
    %v45 = vld [vmem:[%s3 + $0x4] sm:$0xf]
    %v46 = vld [vmem:[%s3 + $0x8] sm:$0xf]
    %v47 = vld [vmem:[%s3 + $0xc] sm:$0xf]
    %v48 = vld [vmem:[%s3 + $0x10] sm:$0xf]
    %v49 = vld [vmem:[%s3 + $0x14] sm:$0xf]
    %v50 = vld [vmem:[%s3 + $0x18] sm:$0xf]
    %v51 = vld [vmem:[%s3 + $0x1c] sm:$0xf]
    %v52 = vld [vmem:[%s3 + $0x20] sm:$0xf]
    %v53 = vld [vmem:[%s3 + $0x24] sm:$0xf]
    %v54 = vld [vmem:[%s3 + $0x28] sm:$0xf]
    %v55 = vld [vmem:[%s3 + $0x2c] sm:$0xf]
    %v56 = vld [vmem:[%s3 + $0x30] sm:$0xf]
    %v57 = vld [vmem:[%s3 + $0x34] sm:$0xf]
    %v58 = vld [vmem:[%s3 + $0x38] sm:$0xf]
    %v59 = vld [vmem:[%s3 + $0x3c] sm:$0xf]
    %v60 = vld [vmem:[%s3 + $0x40] sm:$0xf]
    %v61 = vld [vmem:[%s3 + $0x44] sm:$0xf]
    %v62 = vld [vmem:[%s3 + $0x48] sm:$0xf]
    %v63 = vld [vmem:[%s3 + $0x4c] sm:$0xf]
    %v64 = vld [vmem:[%s3 + $0x50] sm:$0xf]
    %v65 = vld [vmem:[%s3 + $0x54] sm:$0xf]
    %v66 = vld [vmem:[%s3 + $0x58] sm:$0xf]
    %v67 = vld [vmem:[%s3 + $0x5c] sm:$0xf]
    %v68 = vld [vmem:[%s3 + $0x60] sm:$0xf]
    %v69 = vld [vmem:[%s3 + $0x64] sm:$0xf]
    %v70 = vld [vmem:[%s3 + $0x68] sm:$0xf]
    %v71 = vld [vmem:[%s3 + $0x6c] sm:$0xf]
    %v72 = vld [vmem:[%s3 + $0x70] sm:$0xf]
    %v73 = vld [vmem:[%s3 + $0x74] sm:$0xf]
    %v74 = vld [vmem:[%s3 + $0x78] sm:$0xf]
    %v75 = vld [vmem:[%s3 + $0x7c] sm:$0xf]
    %v76 = vld [vmem:[%s3 + $0x80] sm:$0xf]
    %v77 = vld [vmem:[%s3 + $0x84] sm:$0xf]
    %v78 = vld [vmem:[%s3 + $0x88] sm:$0xf]
    %v79 = vld [vmem:[%s3 + $0x8c] sm:$0xf]
    %v80 = vld [vmem:[%s3 + $0x90] sm:$0xf]
    %v81 = vld [vmem:[%s3 + $0x94] sm:$0xf]
    %v82 = vld [vmem:[%s3 + $0x98] sm:$0xf]
    %v83 = vld [vmem:[%s3 + $0x9c] sm:$0xf]
    %v84 = vld [vmem:[%s3 + $0xa0] sm:$0xf]
    %v85 = vld [vmem:[%s3 + $0xa4] sm:$0xf]
    %v86 = vld [vmem:[%s3 + $0xa8] sm:$0xf]
    %v87 = vld [vmem:[%s3 + $0xac] sm:$0xf]
    %v88 = vld [vmem:[%s3 + $0xb0] sm:$0xf]
    %v89 = vld [vmem:[%s3 + $0xb4] sm:$0xf]
    %v90 = vld [vmem:[%s3 + $0xb8] sm:$0xf]
    %v91 = vld [vmem:[%s3 + $0xbc] sm:$0xf]
    %v92 = vld [vmem:[%s3 + $0xc0] sm:$0xf]
    %v93 = vld [vmem:[%s3 + $0xc4] sm:$0xf]
    %v94 = vld [vmem:[%s3 + $0xc8] sm:$0xf]
    %v95 = vld [vmem:[%s3 + $0xcc] sm:$0xf]
    %v96 = vld [vmem:[%s3 + $0xd0] sm:$0xf]
    %v97 = vld [vmem:[%s3 + $0xd4] sm:$0xf]
    %v98 = vld [vmem:[%s3 + $0xd8] sm:$0xf]
    %v99 = vld [vmem:[%s3 + $0xdc] sm:$0xf]
    %v100 = vld [vmem:[%s3 + $0xe0] sm:$0xf]
    %v101 = vld [vmem:[%s3 + $0xe4] sm:$0xf]
    %v102 = vld [vmem:[%s3 + $0xe8] sm:$0xf]
    %v103 = vld [vmem:[%s3 + $0xec] sm:$0xf]
    %v104 = vld [vmem:[%s3 + $0xf0] sm:$0xf]
    %v105 = vld [vmem:[%s3 + $0xf4] sm:$0xf]
    %v106 = vld [vmem:[%s3 + $0xf8] sm:$0xf]
    %v107 = vld [vmem:[%s3 + $0xfc] sm:$0xf]
    %v108 = vld [vmem:[%s3 + $0x100] sm:$0xf]
    %v109 = vld [vmem:[%s3 + $0x104] sm:$0xf]
    %v110 = vld [vmem:[%s3 + $0x108] sm:$0xf]
    %v111 = vld [vmem:[%s3 + $0x10c] sm:$0xf]
    %v112 = vld [vmem:[%s3 + $0x110] sm:$0xf]
    %v113 = vld [vmem:[%s3 + $0x114] sm:$0xf]
    %v114 = vld [vmem:[%s3 + $0x118] sm:$0xf]
    %v115 = vld [vmem:[%s3 + $0x11c] sm:$0xf]
    %v116 = vld [vmem:[%s3 + $0x120] sm:$0xf]
    %v117 = vld [vmem:[%s3 + $0x124] sm:$0xf]
    %v118 = vld [vmem:[%s3 + $0x128] sm:$0xf]
    %v119 = vld [vmem:[%s3 + $0x12c] sm:$0xf]
    %v120 = vld [vmem:[%s3 + $0x130] sm:$0xf]
    %v121 = vld [vmem:[%s3 + $0x134] sm:$0xf]
    %v122 = vld [vmem:[%s3 + $0x138] sm:$0xf]
    %v123 = vld [vmem:[%s3 + $0x13c] sm:$0xf]
    %v124 = vld [vmem:[%s3 + $0x140] sm:$0xf]
    %v125 = vld [vmem:[%s3 + $0x144] sm:$0xf]
    %v126 = vld [vmem:[%s3 + $0x148] sm:$0xf]
    %v127 = vld [vmem:[%s3 + $0x14c] sm:$0xf]
    %v128 = vld [vmem:[%s3 + $0x150] sm:$0xf]
    %v129 = vld [vmem:[%s3 + $0x154] sm:$0xf]
    %v130 = vld [vmem:[%s3 + $0x158] sm:$0xf]
    %v131 = vld [vmem:[%s3 + $0x15c] sm:$0xf]
    %v132 = vld [vmem:[%s3 + $0x160] sm:$0xf]
    %v133 = vld [vmem:[%s3 + $0x164] sm:$0xf]
    %v134 = vld [vmem:[%s3 + $0x168] sm:$0xf]
    %v135 = vld [vmem:[%s3 + $0x16c] sm:$0xf]
    %v136 = vld [vmem:[%s3 + $0x170] sm:$0xf]
    %v137 = vld [vmem:[%s3 + $0x174] sm:$0xf]
    %v138 = vld [vmem:[%s3 + $0x178] sm:$0xf]
    %v139 = vld [vmem:[%s3 + $0x17c] sm:$0xf]
    %v140 = vld [vmem:[%s3 + $0x180] sm:$0xf]
    %v141 = vld [vmem:[%s3 + $0x184] sm:$0xf]
    %v142 = vld [vmem:[%s3 + $0x188] sm:$0xf]
    %v143 = vld [vmem:[%s3 + $0x18c] sm:$0xf]
    %v144 = vld [vmem:[%s3 + $0x190] sm:$0xf]
    %v145 = vld [vmem:[%s3 + $0x194] sm:$0xf]
    %v146 = vld [vmem:[%s3 + $0x198] sm:$0xf]
    %v147 = vld [vmem:[%s3 + $0x19c] sm:$0xf]
    %v148 = vld [vmem:[%s3 + $0x1a0] sm:$0xf]
    %v149 = vld [vmem:[%s3 + $0x1a4] sm:$0xf]
    %v150 = vld [vmem:[%s3 + $0x1a8] sm:$0xf]
    %v151 = vld [vmem:[%s3 + $0x1ac] sm:$0xf]
    %v152 = vld [vmem:[%s3 + $0x1b0] sm:$0xf]
    %v153 = vld [vmem:[%s3 + $0x1b4] sm:$0xf]
    %v154 = vld [vmem:[%s3 + $0x1b8] sm:$0xf]
    %v155 = vld [vmem:[%s3 + $0x1bc] sm:$0xf]
    %v156 = vld [vmem:[%s3 + $0x1c0] sm:$0xf]
    %v157 = vld [vmem:[%s3 + $0x1c4] sm:$0xf]
    %v158 = vld [vmem:[%s3 + $0x1c8] sm:$0xf]
    %v159 = vld [vmem:[%s3 + $0x1cc] sm:$0xf]
    %v160 = vld [vmem:[%s3 + $0x1d0] sm:$0xf]
    %v161 = vld [vmem:[%s3 + $0x1d4] sm:$0xf]
    %v162 = vld [vmem:[%s3 + $0x1d8] sm:$0xf]
    %v163 = vld [vmem:[%s3 + $0x1dc] sm:$0xf]
    %v164 = vld [vmem:[%s3 + $0x1e0] sm:$0xf]
    %v165 = vld [vmem:[%s3 + $0x1e4] sm:$0xf]
    %v166 = vld [vmem:[%s3 + $0x1e8] sm:$0xf]
    %v167 = vld [vmem:[%s3 + $0x1ec] sm:$0xf]
    %v168 = vld [vmem:[%s3 + $0x1f0] sm:$0xf]
    %v169 = vld [vmem:[%s3 + $0x1f4] sm:$0xf]
    %v170 = vld [vmem:[%s3 + $0x1f8] sm:$0xf]
    %v171 = vld [vmem:[%s3 + $0x1fc] sm:$0xf]
    %v172 = vld [vmem:[%s4] sm:$0x1]
    %v173 = vld [vmem:[#allocation2] sm:$0xf]
    %v174 = vld [vmem:[#allocation2 + $0x4] sm:$0xf]
    %v175 = vld [vmem:[#allocation2 + $0x8] sm:$0xf]
    %v176 = vld [vmem:[#allocation2 + $0xc] sm:$0xf]
    %v177 = vld [vmem:[#allocation2 + $0x10] sm:$0xf]
    %v178 = vld [vmem:[#allocation2 + $0x14] sm:$0xf]
    %v179 = vld [vmem:[#allocation2 + $0x18] sm:$0xf]
    %v180 = vld [vmem:[#allocation2 + $0x1c] sm:$0xf]
    %v181 = vld [vmem:[#allocation2 + $0x20] sm:$0xf]
    %v182 = vld [vmem:[#allocation2 + $0x24] sm:$0xf]
    %v183 = vld [vmem:[#allocation2 + $0x28] sm:$0xf]
    %v184 = vld [vmem:[#allocation2 + $0x2c] sm:$0xf]
    %v185 = vld [vmem:[#allocation2 + $0x30] sm:$0xf]
    %v186 = vld [vmem:[#allocation2 + $0x34] sm:$0xf]
    %v187 = vld [vmem:[#allocation2 + $0x38] sm:$0xf]
    %v188 = vld [vmem:[#allocation2 + $0x3c] sm:$0xf]
    %v189 = vld [vmem:[%s6] sm:$0x1]
    %v190 = vld [vmem:[%s0] sm:$0xff]
    %v191 = vld [vmem:[%s0 + $0x8] sm:$0xff]
    %v192 = vld [vmem:[%s0 + $0x10] sm:$0xff]
    %v193 = vld [vmem:[%s0 + $0x18] sm:$0xff]
    %v194 = vld [vmem:[%s0 + $0x20] sm:$0xff]
    %v195 = vld [vmem:[%s0 + $0x28] sm:$0xff]
    %v196 = vld [vmem:[%s0 + $0x30] sm:$0xff]
    %v197 = vld [vmem:[%s0 + $0x38] sm:$0xff]
    %v198 = vpack.c.bf16 %v190, %v190
    %v199 = vpack.c.bf16 %v191, %v191
    %v200 = vpack.c.bf16 %v192, %v192
    %v201 = vpack.c.bf16 %v193, %v193
    %v202 = vpack.c.bf16 %v194, %v194
    %v203 = vpack.c.bf16 %v195, %v195
    %v204 = vpack.c.bf16 %v196, %v196
    %v205 = vpack.c.bf16 %v197, %v197
    %v206 = vld [vmem:[%s1] sm:$0xff]
    %v207 = vld [vmem:[%s1 + $0x8] sm:$0xff]
    %v208 = vld [vmem:[%s1 + $0x10] sm:$0xff]
    %v209 = vld [vmem:[%s1 + $0x18] sm:$0xff]
    %v210 = vld [vmem:[%s1 + $0x20] sm:$0xff]
    %v211 = vld [vmem:[%s1 + $0x28] sm:$0xff]
    %v212 = vld [vmem:[%s1 + $0x30] sm:$0xff]
    %v213 = vld [vmem:[%s1 + $0x38] sm:$0xff]
    %v214 = vpack.c.bf16 %v206, %v206
    %v215 = vpack.c.bf16 %v207, %v207
    %v216 = vpack.c.bf16 %v208, %v208
    %v217 = vpack.c.bf16 %v209, %v209
    %v218 = vpack.c.bf16 %v210, %v210
    %v219 = vpack.c.bf16 %v211, %v211
    %v220 = vpack.c.bf16 %v212, %v212
    %v221 = vpack.c.bf16 %v213, %v213
    %v222 = vld [vmem:[%s2] sm:$0xff]
    %v223 = vld [vmem:[%s2 + $0x8] sm:$0xff]
    %v224 = vld [vmem:[%s2 + $0x10] sm:$0xff]
    %v225 = vld [vmem:[%s2 + $0x18] sm:$0xff]
    %v226 = vld [vmem:[%s2 + $0x20] sm:$0xff]
    %v227 = vld [vmem:[%s2 + $0x28] sm:$0xff]
    %v228 = vld [vmem:[%s2 + $0x30] sm:$0xff]
    %v229 = vld [vmem:[%s2 + $0x38] sm:$0xff]
    %v230 = vpack.c.bf16 %v222, %v222
    %v231 = vpack.c.bf16 %v223, %v223
    %v232 = vpack.c.bf16 %v224, %v224
    %v233 = vpack.c.bf16 %v225, %v225
    %v234 = vpack.c.bf16 %v226, %v226
    %v235 = vpack.c.bf16 %v227, %v227
    %v236 = vpack.c.bf16 %v228, %v228
    %v237 = vpack.c.bf16 %v229, %v229
    %v246 = vrot.slane %v214, 4
    %v247 = vrot.slane %v215, 4
    %v248 = vrot.slane %v216, 4
    %v249 = vrot.slane %v217, 4
    %v250 = vrot.slane %v218, 4
    %v251 = vrot.slane %v219, 4
    %v252 = vrot.slane %v220, 4
    %v253 = vrot.slane %v221, 4
    %vm254 = vcmask 1043456
    %v257 = vsel %vm254, %v198, %v246
    %v261 = vsel %vm254, %v199, %v247
    %v265 = vsel %vm254, %v200, %v248
    %v269 = vsel %vm254, %v201, %v249
    %v273 = vsel %vm254, %v202, %v250
    %v277 = vsel %vm254, %v203, %v251
    %v281 = vsel %vm254, %v204, %v252
    %v285 = vsel %vm254, %v205, %v253
    %v288 = vlaneseq
    %v289 = vshrl.u32 %v288, 7
    %v290 = vsub.s32 0, %v289
    %v291 = vrot.slane %v172, %v290
    %v421 = vunpack.c.l.b16 %v44
    %v422 = vunpack.c.l.b16 %v45
    %v423 = vunpack.c.l.b16 %v46
    %v424 = vunpack.c.l.b16 %v47
    %v425 = vunpack.c.l.b16 %v48
    %v426 = vunpack.c.l.b16 %v49
    %v427 = vunpack.c.l.b16 %v50
    %v428 = vunpack.c.l.b16 %v51
    %v429 = vunpack.c.l.b16 %v52
    %v430 = vunpack.c.l.b16 %v53
    %v431 = vunpack.c.l.b16 %v54
    %v432 = vunpack.c.l.b16 %v55
    %v433 = vunpack.c.l.b16 %v56
    %v434 = vunpack.c.l.b16 %v57
    %v435 = vunpack.c.l.b16 %v58
    %v436 = vunpack.c.l.b16 %v59
    %v437 = vunpack.c.l.b16 %v60
    %v438 = vunpack.c.l.b16 %v61
    %v439 = vunpack.c.l.b16 %v62
    %v440 = vunpack.c.l.b16 %v63
    %v441 = vunpack.c.l.b16 %v64
    %v442 = vunpack.c.l.b16 %v65
    %v443 = vunpack.c.l.b16 %v66
    %v444 = vunpack.c.l.b16 %v67
    %v445 = vunpack.c.l.b16 %v68
    %v446 = vunpack.c.l.b16 %v69
    %v447 = vunpack.c.l.b16 %v70
    %v448 = vunpack.c.l.b16 %v71
    %v449 = vunpack.c.l.b16 %v72
    %v450 = vunpack.c.l.b16 %v73
    %v451 = vunpack.c.l.b16 %v74
    %v452 = vunpack.c.l.b16 %v75
    %v453 = vunpack.c.l.b16 %v76
    %v454 = vunpack.c.l.b16 %v77
    %v455 = vunpack.c.l.b16 %v78
    %v456 = vunpack.c.l.b16 %v79
    %v457 = vunpack.c.l.b16 %v80
    %v458 = vunpack.c.l.b16 %v81
    %v459 = vunpack.c.l.b16 %v82
    %v460 = vunpack.c.l.b16 %v83
    %v461 = vunpack.c.l.b16 %v84
    %v462 = vunpack.c.l.b16 %v85
    %v463 = vunpack.c.l.b16 %v86
    %v464 = vunpack.c.l.b16 %v87
    %v465 = vunpack.c.l.b16 %v88
    %v466 = vunpack.c.l.b16 %v89
    %v467 = vunpack.c.l.b16 %v90
    %v468 = vunpack.c.l.b16 %v91
    %v469 = vunpack.c.l.b16 %v92
    %v470 = vunpack.c.l.b16 %v93
    %v471 = vunpack.c.l.b16 %v94
    %v472 = vunpack.c.l.b16 %v95
    %v473 = vunpack.c.l.b16 %v96
    %v474 = vunpack.c.l.b16 %v97
    %v475 = vunpack.c.l.b16 %v98
    %v476 = vunpack.c.l.b16 %v99
    %v477 = vunpack.c.l.b16 %v100
    %v478 = vunpack.c.l.b16 %v101
    %v479 = vunpack.c.l.b16 %v102
    %v480 = vunpack.c.l.b16 %v103
    %v481 = vunpack.c.l.b16 %v104
    %v482 = vunpack.c.l.b16 %v105
    %v483 = vunpack.c.l.b16 %v106
    %v484 = vunpack.c.l.b16 %v107
    %v485 = vunpack.c.l.b16 %v108
    %v486 = vunpack.c.l.b16 %v109
    %v487 = vunpack.c.l.b16 %v110
    %v488 = vunpack.c.l.b16 %v111
    %v489 = vunpack.c.l.b16 %v112
    %v490 = vunpack.c.l.b16 %v113
    %v491 = vunpack.c.l.b16 %v114
    %v492 = vunpack.c.l.b16 %v115
    %v493 = vunpack.c.l.b16 %v116
    %v494 = vunpack.c.l.b16 %v117
    %v495 = vunpack.c.l.b16 %v118
    %v496 = vunpack.c.l.b16 %v119
    %v497 = vunpack.c.l.b16 %v120
    %v498 = vunpack.c.l.b16 %v121
    %v499 = vunpack.c.l.b16 %v122
    %v500 = vunpack.c.l.b16 %v123
    %v501 = vunpack.c.l.b16 %v124
    %v502 = vunpack.c.l.b16 %v125
    %v503 = vunpack.c.l.b16 %v126
    %v504 = vunpack.c.l.b16 %v127
    %v505 = vunpack.c.l.b16 %v128
    %v506 = vunpack.c.l.b16 %v129
    %v507 = vunpack.c.l.b16 %v130
    %v508 = vunpack.c.l.b16 %v131
    %v509 = vunpack.c.l.b16 %v132
    %v510 = vunpack.c.l.b16 %v133
    %v511 = vunpack.c.l.b16 %v134
    %v512 = vunpack.c.l.b16 %v135
    %v513 = vunpack.c.l.b16 %v136
    %v514 = vunpack.c.l.b16 %v137
    %v515 = vunpack.c.l.b16 %v138
    %v516 = vunpack.c.l.b16 %v139
    %v517 = vunpack.c.l.b16 %v140
    %v518 = vunpack.c.l.b16 %v141
    %v519 = vunpack.c.l.b16 %v142
    %v520 = vunpack.c.l.b16 %v143
    %v521 = vunpack.c.l.b16 %v144
    %v522 = vunpack.c.l.b16 %v145
    %v523 = vunpack.c.l.b16 %v146
    %v524 = vunpack.c.l.b16 %v147
    %v525 = vunpack.c.l.b16 %v148
    %v526 = vunpack.c.l.b16 %v149
    %v527 = vunpack.c.l.b16 %v150
    %v528 = vunpack.c.l.b16 %v151
    %v529 = vunpack.c.l.b16 %v152
    %v530 = vunpack.c.l.b16 %v153
    %v531 = vunpack.c.l.b16 %v154
    %v532 = vunpack.c.l.b16 %v155
    %v533 = vunpack.c.l.b16 %v156
    %v534 = vunpack.c.l.b16 %v157
    %v535 = vunpack.c.l.b16 %v158
    %v536 = vunpack.c.l.b16 %v159
    %v537 = vunpack.c.l.b16 %v160
    %v538 = vunpack.c.l.b16 %v161
    %v539 = vunpack.c.l.b16 %v162
    %v540 = vunpack.c.l.b16 %v163
    %v541 = vunpack.c.l.b16 %v164
    %v542 = vunpack.c.l.b16 %v165
    %v543 = vunpack.c.l.b16 %v166
    %v544 = vunpack.c.l.b16 %v167
    %v545 = vunpack.c.l.b16 %v168
    %v546 = vunpack.c.l.b16 %v169
    %v547 = vunpack.c.l.b16 %v170
    %v548 = vunpack.c.l.b16 %v171
    %v549 = vpack.c.b16 %v422, %v421
    %v550 = vpack.c.b16 %v424, %v423
    %v551 = vpack.c.b16 %v426, %v425
    %v552 = vpack.c.b16 %v428, %v427
    %v553 = vpack.c.b16 %v430, %v429
    %v554 = vpack.c.b16 %v432, %v431
    %v555 = vpack.c.b16 %v434, %v433
    %v556 = vpack.c.b16 %v436, %v435
    %v557 = vpack.c.b16 %v438, %v437
    %v558 = vpack.c.b16 %v440, %v439
    %v559 = vpack.c.b16 %v442, %v441
    %v560 = vpack.c.b16 %v444, %v443
    %v561 = vpack.c.b16 %v446, %v445
    %v562 = vpack.c.b16 %v448, %v447
    %v563 = vpack.c.b16 %v450, %v449
    %v564 = vpack.c.b16 %v452, %v451
    %v565 = vpack.c.b16 %v454, %v453
    %v566 = vpack.c.b16 %v456, %v455
    %v567 = vpack.c.b16 %v458, %v457
    %v568 = vpack.c.b16 %v460, %v459
    %v569 = vpack.c.b16 %v462, %v461
    %v570 = vpack.c.b16 %v464, %v463
    %v571 = vpack.c.b16 %v466, %v465
    %v572 = vpack.c.b16 %v468, %v467
    %v573 = vpack.c.b16 %v470, %v469
    %v574 = vpack.c.b16 %v472, %v471
    %v575 = vpack.c.b16 %v474, %v473
    %v576 = vpack.c.b16 %v476, %v475
    %v577 = vpack.c.b16 %v478, %v477
    %v578 = vpack.c.b16 %v480, %v479
    %v579 = vpack.c.b16 %v482, %v481
    %v580 = vpack.c.b16 %v484, %v483
    %v581 = vpack.c.b16 %v486, %v485
    %v582 = vpack.c.b16 %v488, %v487
    %v583 = vpack.c.b16 %v490, %v489
    %v584 = vpack.c.b16 %v492, %v491
    %v585 = vpack.c.b16 %v494, %v493
    %v586 = vpack.c.b16 %v496, %v495
    %v587 = vpack.c.b16 %v498, %v497
    %v588 = vpack.c.b16 %v500, %v499
    %v589 = vpack.c.b16 %v502, %v501
    %v590 = vpack.c.b16 %v504, %v503
    %v591 = vpack.c.b16 %v506, %v505
    %v592 = vpack.c.b16 %v508, %v507
    %v593 = vpack.c.b16 %v510, %v509
    %v594 = vpack.c.b16 %v512, %v511
    %v595 = vpack.c.b16 %v514, %v513
    %v596 = vpack.c.b16 %v516, %v515
    %v597 = vpack.c.b16 %v518, %v517
    %v598 = vpack.c.b16 %v520, %v519
    %v599 = vpack.c.b16 %v522, %v521
    %v600 = vpack.c.b16 %v524, %v523
    %v601 = vpack.c.b16 %v526, %v525
    %v602 = vpack.c.b16 %v528, %v527
    %v603 = vpack.c.b16 %v530, %v529
    %v604 = vpack.c.b16 %v532, %v531
    %v605 = vpack.c.b16 %v534, %v533
    %v606 = vpack.c.b16 %v536, %v535
    %v607 = vpack.c.b16 %v538, %v537
    %v608 = vpack.c.b16 %v540, %v539
    %v609 = vpack.c.b16 %v542, %v541
    %v610 = vpack.c.b16 %v544, %v543
    %v611 = vpack.c.b16 %v546, %v545
    %v612 = vpack.c.b16 %v548, %v547
    %677 = vmatprep.subr.bf16.mxu0 0
    %678 = vmatpush1.bf16.msra.mxu0 %v549
    %679 = vmatprep.subr.bf16.mxu0 0
    %680 = vmatpush1.bf16.msra.mxu0 %v550
    %681 = vmatprep.subr.bf16.mxu0 0
    %682 = vmatpush1.bf16.msra.mxu0 %v551
    %683 = vmatprep.subr.bf16.mxu0 0
    %684 = vmatpush1.bf16.msra.mxu0 %v552
    %685 = vmatprep.subr.bf16.mxu0 0
    %686 = vmatpush1.bf16.msra.mxu0 %v553
    %687 = vmatprep.subr.bf16.mxu0 0
    %688 = vmatpush1.bf16.msra.mxu0 %v554
    %689 = vmatprep.subr.bf16.mxu0 0
    %690 = vmatpush1.bf16.msra.mxu0 %v555
    %691 = vmatprep.subr.bf16.mxu0 0
    %692 = vmatpush1.bf16.msra.mxu0 %v556
    %693 = vmatprep.subr.bf16.mxu0 0
    %694 = vmatpush1.bf16.msra.mxu0 %v557
    %695 = vmatprep.subr.bf16.mxu0 0
    %696 = vmatpush1.bf16.msra.mxu0 %v558
    %697 = vmatprep.subr.bf16.mxu0 0
    %698 = vmatpush1.bf16.msra.mxu0 %v559
    %699 = vmatprep.subr.bf16.mxu0 0
    %700 = vmatpush1.bf16.msra.mxu0 %v560
    %701 = vmatprep.subr.bf16.mxu0 0
    %702 = vmatpush1.bf16.msra.mxu0 %v561
    %703 = vmatprep.subr.bf16.mxu0 0
    %704 = vmatpush1.bf16.msra.mxu0 %v562
    %705 = vmatprep.subr.bf16.mxu0 0
    %706 = vmatpush1.bf16.msra.mxu0 %v563
    %707 = vmatprep.subr.bf16.mxu0 0
    %708 = vmatpush1.bf16.msra.mxu0 %v564
    %709 = vmatprep.mubr.bf16.mxu0 %v261
    %710 = vmatmul.mubr.bf16.gmra.mrb[0].mxu0 %v257
    %v711 = vpop.f32.mrb[0].mxu0
    %v712 = vadd.f32 %v291, %v711
    %v713 = vpop.f32.mrb[0].mxu0
    %v714 = vpop.f32.mrb[0].mxu0
    %v715 = vadd.f32 %v291, %v714
    %v716 = vpop.f32.mrb[0].mxu0
    %717 = vmatprep.mubr.bf16.mxu0 %v231
    %718 = vmatmul.mubr.bf16.gmra.mrb[0].mxu0 %v230
    %v719 = vpop.f32.mrb[0].mxu0
    %v720 = vadd.f32 %v291, %v719
    %v721 = vpop.f32.mrb[0].mxu0
    %v722 = vpop.f32.mrb[0].mxu0
    %v723 = vpop.f32.mrb[0].mxu0
    %724 = vdwg.mxu0
    %725 = vmatprep.subr.bf16.mxu0 0
    %726 = vmatpush1.bf16.msra.mxu0 %v565
    %727 = vmatprep.subr.bf16.mxu0 0
    %728 = vmatpush1.bf16.msra.mxu0 %v566
    %729 = vmatprep.subr.bf16.mxu0 0
    %730 = vmatpush1.bf16.msra.mxu0 %v567
    %731 = vmatprep.subr.bf16.mxu0 0
    %732 = vmatpush1.bf16.msra.mxu0 %v568
    %733 = vmatprep.subr.bf16.mxu0 0
    %734 = vmatpush1.bf16.msra.mxu0 %v569
    %735 = vmatprep.subr.bf16.mxu0 0
    %736 = vmatpush1.bf16.msra.mxu0 %v570
    %737 = vmatprep.subr.bf16.mxu0 0
    %738 = vmatpush1.bf16.msra.mxu0 %v571
    %739 = vmatprep.subr.bf16.mxu0 0
    %740 = vmatpush1.bf16.msra.mxu0 %v572
    %741 = vmatprep.subr.bf16.mxu0 0
    %742 = vmatpush1.bf16.msra.mxu0 %v573
    %743 = vmatprep.subr.bf16.mxu0 0
    %744 = vmatpush1.bf16.msra.mxu0 %v574
    %745 = vmatprep.subr.bf16.mxu0 0
    %746 = vmatpush1.bf16.msra.mxu0 %v575
    %747 = vmatprep.subr.bf16.mxu0 0
    %748 = vmatpush1.bf16.msra.mxu0 %v576
    %749 = vmatprep.subr.bf16.mxu0 0
    %750 = vmatpush1.bf16.msra.mxu0 %v577
    %751 = vmatprep.subr.bf16.mxu0 0
    %752 = vmatpush1.bf16.msra.mxu0 %v578
    %753 = vmatprep.subr.bf16.mxu0 0
    %754 = vmatpush1.bf16.msra.mxu0 %v579
    %755 = vmatprep.subr.bf16.mxu0 0
    %756 = vmatpush1.bf16.msra.mxu0 %v580
    %757 = vmatprep.mubr.bf16.mxu0 %v269
    %758 = vmatmul.mubr.bf16.gmra.mrb[0].mxu0 %v265
    %v759 = vpop.f32.mrb[0].mxu0
    %v760 = vadd.f32 %v712, %v759
    %v761 = vpop.f32.mrb[0].mxu0
    %v762 = vpop.f32.mrb[0].mxu0
    %v763 = vadd.f32 %v715, %v762
    %v764 = vpop.f32.mrb[0].mxu0
    %765 = vmatprep.mubr.bf16.mxu0 %v233
    %766 = vmatmul.mubr.bf16.gmra.mrb[0].mxu0 %v232
    %v767 = vpop.f32.mrb[0].mxu0
    %v768 = vadd.f32 %v720, %v767
    %v769 = vpop.f32.mrb[0].mxu0
    %v770 = vpop.f32.mrb[0].mxu0
    %v771 = vpop.f32.mrb[0].mxu0
    %772 = vdwg.mxu0
    %773 = vmatprep.subr.bf16.mxu0 0
    %774 = vmatpush1.bf16.msra.mxu0 %v581
    %775 = vmatprep.subr.bf16.mxu0 0
    %776 = vmatpush1.bf16.msra.mxu0 %v582
    %777 = vmatprep.subr.bf16.mxu0 0
    %778 = vmatpush1.bf16.msra.mxu0 %v583
    %779 = vmatprep.subr.bf16.mxu0 0
    %780 = vmatpush1.bf16.msra.mxu0 %v584
    %781 = vmatprep.subr.bf16.mxu0 0
    %782 = vmatpush1.bf16.msra.mxu0 %v585
    %783 = vmatprep.subr.bf16.mxu0 0
    %784 = vmatpush1.bf16.msra.mxu0 %v586
    %785 = vmatprep.subr.bf16.mxu0 0
    %786 = vmatpush1.bf16.msra.mxu0 %v587
    %787 = vmatprep.subr.bf16.mxu0 0
    %788 = vmatpush1.bf16.msra.mxu0 %v588
    %789 = vmatprep.subr.bf16.mxu0 0
    %790 = vmatpush1.bf16.msra.mxu0 %v589
    %791 = vmatprep.subr.bf16.mxu0 0
    %792 = vmatpush1.bf16.msra.mxu0 %v590
    %793 = vmatprep.subr.bf16.mxu0 0
    %794 = vmatpush1.bf16.msra.mxu0 %v591
    %795 = vmatprep.subr.bf16.mxu0 0
    %796 = vmatpush1.bf16.msra.mxu0 %v592
    %797 = vmatprep.subr.bf16.mxu0 0
    %798 = vmatpush1.bf16.msra.mxu0 %v593
    %799 = vmatprep.subr.bf16.mxu0 0
    %800 = vmatpush1.bf16.msra.mxu0 %v594
    %801 = vmatprep.subr.bf16.mxu0 0
    %802 = vmatpush1.bf16.msra.mxu0 %v595
    %803 = vmatprep.subr.bf16.mxu0 0
    %804 = vmatpush1.bf16.msra.mxu0 %v596
    %805 = vmatprep.mubr.bf16.mxu0 %v277
    %806 = vmatmul.mubr.bf16.gmra.mrb[0].mxu0 %v273
    %v807 = vpop.f32.mrb[0].mxu0
    %v808 = vadd.f32 %v760, %v807
    %v809 = vpop.f32.mrb[0].mxu0
    %v810 = vpop.f32.mrb[0].mxu0
    %v811 = vadd.f32 %v763, %v810
    %v812 = vpop.f32.mrb[0].mxu0
    %813 = vmatprep.mubr.bf16.mxu0 %v235
    %814 = vmatmul.mubr.bf16.gmra.mrb[0].mxu0 %v234
    %v815 = vpop.f32.mrb[0].mxu0
    %v816 = vadd.f32 %v768, %v815
    %v817 = vpop.f32.mrb[0].mxu0
    %v818 = vpop.f32.mrb[0].mxu0
    %v819 = vpop.f32.mrb[0].mxu0
    %820 = vdwg.mxu0
    %821 = vmatprep.subr.bf16.mxu0 0
    %822 = vmatpush1.bf16.msra.mxu0 %v597
    %823 = vmatprep.subr.bf16.mxu0 0
    %824 = vmatpush1.bf16.msra.mxu0 %v598
    %825 = vmatprep.subr.bf16.mxu0 0
    %826 = vmatpush1.bf16.msra.mxu0 %v599
    %827 = vmatprep.subr.bf16.mxu0 0
    %828 = vmatpush1.bf16.msra.mxu0 %v600
    %829 = vmatprep.subr.bf16.mxu0 0
    %830 = vmatpush1.bf16.msra.mxu0 %v601
    %831 = vmatprep.subr.bf16.mxu0 0
    %832 = vmatpush1.bf16.msra.mxu0 %v602
    %833 = vmatprep.subr.bf16.mxu0 0
    %834 = vmatpush1.bf16.msra.mxu0 %v603
    %835 = vmatprep.subr.bf16.mxu0 0
    %836 = vmatpush1.bf16.msra.mxu0 %v604
    %837 = vmatprep.subr.bf16.mxu0 0
    %838 = vmatpush1.bf16.msra.mxu0 %v605
    %839 = vmatprep.subr.bf16.mxu0 0
    %840 = vmatpush1.bf16.msra.mxu0 %v606
    %841 = vmatprep.subr.bf16.mxu0 0
    %842 = vmatpush1.bf16.msra.mxu0 %v607
    %843 = vmatprep.subr.bf16.mxu0 0
    %844 = vmatpush1.bf16.msra.mxu0 %v608
    %845 = vmatprep.subr.bf16.mxu0 0
    %846 = vmatpush1.bf16.msra.mxu0 %v609
    %847 = vmatprep.subr.bf16.mxu0 0
    %848 = vmatpush1.bf16.msra.mxu0 %v610
    %849 = vmatprep.subr.bf16.mxu0 0
    %850 = vmatpush1.bf16.msra.mxu0 %v611
    %851 = vmatprep.subr.bf16.mxu0 0
    %852 = vmatpush1.bf16.msra.mxu0 %v612
    %853 = vmatprep.mubr.bf16.mxu0 %v285
    %854 = vmatmul.mubr.bf16.gmra.mrb[0].mxu0 %v281
    %v855 = vpop.f32.mrb[0].mxu0
    %v856 = vadd.f32 %v808, %v855
    %v857 = vpop.f32.mrb[0].mxu0
    %v858 = vpop.f32.mrb[0].mxu0
    %v859 = vadd.f32 %v811, %v858
    %v860 = vpop.f32.mrb[0].mxu0
    %861 = vmatprep.mubr.bf16.mxu0 %v237
    %862 = vmatmul.mubr.bf16.gmra.mrb[0].mxu0 %v236
    %v863 = vpop.f32.mrb[0].mxu0
    %v864 = vadd.f32 %v816, %v863
    %v865 = vpop.f32.mrb[0].mxu0
    %v866 = vpop.f32.mrb[0].mxu0
    %v867 = vpop.f32.mrb[0].mxu0
    %868 = vdwg.mxu0
    %v869 = vmax.f32 %v856, 0.0
    %v870 = vmax.f32 %v859, 0.0
    %v871 = vmax.f32 %v864, 0.0
    %v872 = vpack.c.bf16 %v870, %v869
    %v873 = vpack.c.bf16 %v871, %v871
    %v875 = vlaneseq
    %v876 = vshrl.u32 %v875, 7
    %v877 = vsub.s32 0, %v876
    %v878 = vrot.slane %v189, %v877
    %v896 = vunpack.c.l.b16 %v173
    %v897 = vunpack.c.l.b16 %v174
    %v898 = vunpack.c.l.b16 %v175
    %v899 = vunpack.c.l.b16 %v176
    %v900 = vunpack.c.l.b16 %v177
    %v901 = vunpack.c.l.b16 %v178
    %v902 = vunpack.c.l.b16 %v179
    %v903 = vunpack.c.l.b16 %v180
    %v904 = vunpack.c.l.b16 %v181
    %v905 = vunpack.c.l.b16 %v182
    %v906 = vunpack.c.l.b16 %v183
    %v907 = vunpack.c.l.b16 %v184
    %v908 = vunpack.c.l.b16 %v185
    %v909 = vunpack.c.l.b16 %v186
    %v910 = vunpack.c.l.b16 %v187
    %v911 = vunpack.c.l.b16 %v188
    %v912 = vpack.c.b16 %v897, %v896
    %v913 = vpack.c.b16 %v899, %v898
    %v914 = vpack.c.b16 %v901, %v900
    %v915 = vpack.c.b16 %v903, %v902
    %v916 = vpack.c.b16 %v905, %v904
    %v917 = vpack.c.b16 %v907, %v906
    %v918 = vpack.c.b16 %v909, %v908
    %v919 = vpack.c.b16 %v911, %v910
    %928 = vmatprep.subr.bf16.mxu0 0
    %929 = vmatpush1.bf16.msra.mxu0 %v912
    %930 = vmatprep.subr.bf16.mxu0 0
    %931 = vmatpush1.bf16.msra.mxu0 %v913
    %932 = vmatprep.subr.bf16.mxu0 0
    %933 = vmatpush1.bf16.msra.mxu0 %v914
    %934 = vmatprep.subr.bf16.mxu0 0
    %935 = vmatpush1.bf16.msra.mxu0 %v915
    %936 = vmatprep.subr.bf16.mxu0 0
    %937 = vmatpush1.bf16.msra.mxu0 %v916
    %938 = vmatprep.subr.bf16.mxu0 0
    %939 = vmatpush1.bf16.msra.mxu0 %v917
    %940 = vmatprep.subr.bf16.mxu0 0
    %941 = vmatpush1.bf16.msra.mxu0 %v918
    %942 = vmatprep.subr.bf16.mxu0 0
    %943 = vmatpush1.bf16.msra.mxu0 %v919
    %944 = vmatprep.subr.bf16.mxu0 0
    %945 = vmatpush1.bf16.msra.mxu0 0
    %946 = vmatprep.subr.bf16.mxu0 0
    %947 = vmatpush1.bf16.msra.mxu0 0
    %948 = vmatprep.subr.bf16.mxu0 0
    %949 = vmatpush1.bf16.msra.mxu0 0
    %950 = vmatprep.subr.bf16.mxu0 0
    %951 = vmatpush1.bf16.msra.mxu0 0
    %952 = vmatprep.subr.bf16.mxu0 0
    %953 = vmatpush1.bf16.msra.mxu0 0
    %954 = vmatprep.subr.bf16.mxu0 0
    %955 = vmatpush1.bf16.msra.mxu0 0
    %956 = vmatprep.subr.bf16.mxu0 0
    %957 = vmatpush1.bf16.msra.mxu0 0
    %958 = vmatprep.subr.bf16.mxu0 0
    %959 = vmatpush1.bf16.msra.mxu0 0
    %960 = vmatprep.mubr.bf16.mxu0 0
    %961 = vmatmul.mubr.bf16.gmra.mrb[0].mxu0 %v872
    %v962 = vpop.f32.mrb[0].mxu0
    %v963 = vadd.f32 %v878, %v962
    %v964 = vpop.f32.mrb[0].mxu0
    %v965 = vpop.f32.mrb[0].mxu0
    %v966 = vadd.f32 %v878, %v965
    %v967 = vpop.f32.mrb[0].mxu0
    %968 = vmatprep.mubr.bf16.mxu0 0
    %969 = vmatmul.mubr.bf16.gmra.mrb[0].mxu0 %v873
    %v970 = vpop.f32.mrb[0].mxu0
    %v971 = vadd.f32 %v878, %v970
    %v972 = vpop.f32.mrb[0].mxu0
    %v973 = vpop.f32.mrb[0].mxu0
    %v974 = vpop.f32.mrb[0].mxu0
    %975 = vdwg.mxu0
    %976 = vst [vmem:[%s7] sm:$0xff] %v963
    %977 = vst [vmem:[%s8] sm:$0xff] %v966
    %978 = vst [vmem:[%s9] sm:$0xff] %v971
    // Predicated region
    $region34: #{triplet_net_forward.1} parent=1 // pred_check
      _
    $region35: #{triplet_net_forward.1} parent=1 // pred_check_branch
      %980 = sbr.rel (0) target = $region37
    $region36: #{triplet_net_forward.1} parent=1 // pred_region
      _
    $region37: #{triplet_net_forward.1} parent=1 // pred_fallthru
      _
    // Predicated region
    $region38: #{triplet_net_forward.1} parent=1 // pred_check
      _
    $region39: #{triplet_net_forward.1} parent=1 // pred_check_branch
      %982 = sbr.rel (0) target = $region41
    $region40: #{triplet_net_forward.1} parent=1 // pred_region
      _
    $region41: #{triplet_net_forward.1} parent=1 // pred_fallthru
      _
    // Predicated region
    $region42: #{triplet_net_forward.1} parent=1 // pred_check
      _
    $region43: #{triplet_net_forward.1} parent=1 // pred_check_branch
      %984 = sbr.rel (0) target = $region45
    $region44: #{triplet_net_forward.1} parent=1 // pred_region
      _
    $region45: #{triplet_net_forward.1} parent=1 // pred_fallthru
      _
    // Predicated region
    $region46: #{triplet_net_forward.1} parent=1 // pred_check
      _
    $region47: #{triplet_net_forward.1} parent=1 // pred_check_branch
      %986 = sbr.rel (0) target = $region49
    $region48: #{triplet_net_forward.1} parent=1 // pred_region
      _
    $region49: #{triplet_net_forward.1} parent=1 // pred_fallthru
      _
    // Predicated region
    $region50: #{triplet_net_forward.1} parent=1 // pred_check
      _
    $region51: #{triplet_net_forward.1} parent=1 // pred_check_branch
      %988 = sbr.rel (0) target = $region53
    $region52: #{triplet_net_forward.1} parent=1 // pred_region
      _
    $region53: #{triplet_net_forward.1} parent=1 // pred_fallthru
      _
    // Predicated region
    $region54: #{triplet_net_forward.1} parent=1 // pred_check
      _
    $region55: #{triplet_net_forward.1} parent=1 // pred_check_branch
      %990 = sbr.rel (0) target = $region57
    $region56: #{triplet_net_forward.1} parent=1 // pred_region
      _
    $region57: #{triplet_net_forward.1} parent=1 // pred_fallthru
      _
    %991 = vsyncpa [#allocation3], 1

</llo_original>
